<compile_context>
chip_gen: v5e
topology: v5e:2x2
jax: 0.10.0
libtpu: 0.0.40
codegen_flags: <defaults>
</compile_context>

<pallas_src>
import functools

import jax
import jax.numpy as jnp
from jax.experimental import pallas as pl
from jax.experimental.pallas import tpu as pltpu

_C = 769
_HW = 11 * 11          # 121
_N = _C * _HW          # 93049, fixed by the torch module's .view(-1, 769*11*11)
_VMEM_LIMIT = 32 * 1024 * 1024   # explicit scoped-VMEM limit, safe on v5e/v6e/v7x
_MAX_SINGLE_BLOCK_B = 32         # above this, tile the batch axis
_BATCH_BLOCK = 32                # ~12.5 MiB/block padded -> fits 32 MiB double-buffered


def _regressor_kernel(x_ref, w_ref, b_ref, o_ref):
    """x_ref: (bb, 769, 121) VMEM, w_ref: (1, 769, 121) VMEM,
    b_ref: (1,) SMEM scalar, o_ref: (bb, 1, 1) VMEM."""
    x = x_ref[...]                                   # (bb, C, HW)
    w = w_ref[...]                                   # (1, C, HW), broadcasts over batch
    prod = x * w                                     # VPU elementwise
    # Two single-axis reductions (lanes, then sublanes) -> (bb, 1, 1) f32.
    acc = jnp.sum(jnp.sum(prod, axis=2, keepdims=True), axis=1, keepdims=True)
    y = acc + b_ref[0]                               # linear bias (SMEM scalar)
    y = jnp.maximum(y, 0.0)                          # relu
    y = 1.0 / (1.0 + jnp.exp(-y))                    # sigmoid (y >= 0: no overflow)
    o_ref[...] = y.astype(o_ref.dtype)


@functools.partial(jax.jit, static_argnames=("batch_block",))
def regressor_forward(x, weight, bias, batch_block=None):
    """x: (B, 769, 11, 11) f32; weight: (1, 93049) f32; bias: (1,) f32 -> (B, 1)."""
    B = x.shape[0]
    assert x.size == B * _N
    # Free row-major views (same semantics as torch .view): sublane-dense layout.
    x3d = x.reshape(B, _C, _HW)
    w3d = weight.reshape(1, _C, _HW)

    if batch_block is None and B > _MAX_SINGLE_BLOCK_B:
        batch_block = _BATCH_BLOCK

    if batch_block is None:
        # Small B: single full-extent block, no grid, no pipeline overhead.
        out = pl.pallas_call(
            _regressor_kernel,
            out_shape=jax.ShapeDtypeStruct((B, 1, 1), jnp.float32),
            in_specs=[
                pl.BlockSpec(memory_space=pltpu.MemorySpace.VMEM),   # x (whole array)
                pl.BlockSpec(memory_space=pltpu.MemorySpace.VMEM),   # weight row
                pl.BlockSpec(memory_space=pltpu.MemorySpace.SMEM),   # bias scalar
            ],
            out_specs=pl.BlockSpec(memory_space=pltpu.MemorySpace.VMEM),
            compiler_params=pltpu.CompilerParams(vmem_limit_bytes=_VMEM_LIMIT),
        )(x3d, w3d, bias)
    else:
        # Large B: tile the batch axis so the working set stays in scoped VMEM
        # and the "parallel" axis can shard across v7x's 2 TensorCores.
        nb = pl.cdiv(B, batch_block)
        out = pl.pallas_call(
            _regressor_kernel,
            out_shape=jax.ShapeDtypeStruct((B, 1, 1), jnp.float32),
            grid=(nb,),
            in_specs=[
                pl.BlockSpec((batch_block, _C, _HW), lambda i: (i, 0, 0)),
                pl.BlockSpec((1, _C, _HW), lambda i: (0, 0, 0)),   # weight reused
                pl.BlockSpec(memory_space=pltpu.MemorySpace.SMEM),  # bias scalar
            ],
            out_specs=pl.BlockSpec((batch_block, 1, 1), lambda i: (i, 0, 0)),
            compiler_params=pltpu.CompilerParams(
                dimension_semantics=("parallel",),
                vmem_limit_bytes=_VMEM_LIMIT),
        )(x3d, w3d, bias)

    return out.reshape(B, 1)


if __name__ == "__main__":
    # Shapes are fixed by the module's forward: features = 769 * 11 * 11 = 93049.
    B, C, H, W = 2, 769, 11, 11
    n = C * H * W

    key = jax.random.PRNGKey(0)
    kx, kw, kb = jax.random.split(key, 3)

    x = jax.random.normal(kx, (B, C, H, W), dtype=jnp.float32)
    # Deterministic parameter init (uniform in +/- 1/sqrt(n), like nn.Linear).
    bound = 1.0 / jnp.sqrt(jnp.float32(n))
    weight = jax.random.uniform(kw, (1, n), jnp.float32, -bound, bound)
    bias = jax.random.uniform(kb, (1,), jnp.float32, -bound, bound)

    # Pure-JAX reference.
    ref = jax.nn.sigmoid(
        jax.nn.relu(x.reshape(B, -1) @ weight.reshape(n, 1) + bias))

    # Default path: single full-extent block (no grid).
    y = regressor_forward(x, weight, bias)
    jax.block_until_ready(y)
    assert y.shape == (B, 1)
    assert jnp.allclose(y, ref, atol=1e-5, rtol=1e-5)

    # Batch-grid path (used automatically when B grows): exercised here with
    # a tiny block so both code paths are validated on-device.
    y_grid = regressor_forward(x, weight, bias, batch_block=1)
    jax.block_until_ready(y_grid)
    assert jnp.allclose(y_grid, ref, atol=1e-5, rtol=1e-5)

    print("KERNEL_OK")
</pallas_src>

<mosaic_0001>
module attributes {stable_mosaic.version = 11 : i64} {
  func.func @_regressor_kernel(%arg0: memref<2x769x121xf32, #tpu.memory_space<vmem>>, %arg1: memref<1x769x121xf32, #tpu.memory_space<vmem>>, %arg2: memref<1xf32, #tpu.memory_space<smem>>, %arg3: memref<2x1x1xf32, #tpu.memory_space<vmem>>) attributes {dimension_semantics = [], scalar_prefetch = 0 : i64, scratch_operands = 0 : i64, tpu.core_type = #tpu.core_type<tc>} {
    %c0 = arith.constant 0 : index
    %c0_0 = arith.constant 0 : index
    %c0_1 = arith.constant 0 : index
    %0 = vector.load %arg0[%c0, %c0_0, %c0_1] : memref<2x769x121xf32, #tpu.memory_space<vmem>>, vector<2x769x121xf32>
    %c0_2 = arith.constant 0 : index
    %c0_3 = arith.constant 0 : index
    %c0_4 = arith.constant 0 : index
    %1 = vector.load %arg1[%c0_2, %c0_3, %c0_4] : memref<1x769x121xf32, #tpu.memory_space<vmem>>, vector<1x769x121xf32>
    %2 = vector.broadcast %1 : vector<1x769x121xf32> to vector<2x769x121xf32>
    %3 = arith.mulf %0, %2 : vector<2x769x121xf32>
    %cst = arith.constant dense<0.000000e+00> : vector<2x769xf32>
    %4 = vector.multi_reduction <add>, %3, %cst [2] : vector<2x769x121xf32> to vector<2x769xf32>
    %5 = vector.shape_cast %4 : vector<2x769xf32> to vector<2x769x1xf32>
    %cst_5 = arith.constant dense<0.000000e+00> : vector<2x1xf32>
    %6 = vector.multi_reduction <add>, %5, %cst_5 [1] : vector<2x769x1xf32> to vector<2x1xf32>
    %7 = vector.shape_cast %6 : vector<2x1xf32> to vector<2x1x1xf32>
    %c0_6 = arith.constant 0 : index
    %8 = memref.load %arg2[%c0_6] : memref<1xf32, #tpu.memory_space<smem>>
    %9 = vector.broadcast %8 : f32 to vector<2x1x1xf32>
    %10 = arith.addf %7, %9 : vector<2x1x1xf32>
    %cst_7 = arith.constant 0.000000e+00 : f32
    %11 = vector.broadcast %cst_7 : f32 to vector<2x1x1xf32>
    %12 = arith.maximumf %10, %11 : vector<2x1x1xf32>
    %cst_8 = arith.constant 0.000000e+00 : f32
    %13 = vector.broadcast %cst_8 : f32 to vector<2x1x1xf32>
    %14 = arith.subf %13, %12 : vector<2x1x1xf32>
    %15 = math.exp %14 : vector<2x1x1xf32>
    %cst_9 = arith.constant 1.000000e+00 : f32
    %16 = vector.broadcast %cst_9 : f32 to vector<2x1x1xf32>
    %17 = arith.addf %16, %15 : vector<2x1x1xf32>
    %cst_10 = arith.constant 1.000000e+00 : f32
    %18 = vector.broadcast %cst_10 : f32 to vector<2x1x1xf32>
    %19 = arith.divf %18, %17 : vector<2x1x1xf32>
    %c0_11 = arith.constant 0 : index
    %c0_12 = arith.constant 0 : index
    %c0_13 = arith.constant 0 : index
    %20 = vector.load %arg3[%c0_11, %c0_12, %c0_13] : memref<2x1x1xf32, #tpu.memory_space<vmem>>, vector<2x1x1xf32>
    tpu.vector_store %arg3[%c0_11, %c0_12, %c0_13], %19 {strides = array<i32>} : memref<2x1x1xf32, #tpu.memory_space<vmem>>, vector<2x1x1xf32>,
    return
  }
}

</mosaic_0001>

<llo_original>
// kernel: regressor_forward.1
$region0: #{regressor_forward.1}
  #allocation0 [shape = 'u32[]', space=smem, size = 0x4, offset = 0x4, fixed_abs, tag = 'smem constant byte address 0x4 - core index']
  #allocation1 [shape = 'u32[72,128]{1,0:T(1,128)}', space=vmem, size = 0x9000, scoped, tag = 'internal scratch']
  #allocation2 [shape = 'f32[1]{0:T(128)S(6)}', space=smem, size = 0x200, scoped, tag = 'scoped memory for regressor_forward.1']
  %s0 = inlined_call_operand.vmem [shape: f32[2,769,121], index: 0, kind: input, shape index: {}]
  %s1 = inlined_call_operand.vmem [shape: f32[1,769,121], index: 1, kind: input, shape index: {}]
  %s2 = inlined_call_operand.<no memory space> [shape: f32[1], index: 2, kind: input, shape index: {}]
  %s3 = inlined_call_operand.vmem [shape: f32[2,1,1], index: 3, kind: output, shape index: {}]
  %s4 = sld [smem:[#allocation0]]
  $region22: #{regressor_forward.1} parent=0
    _
  %s6 = ssub.s32 1, %s4
  %s7 = scalar_select 0, %s6, %s4
  %8 = sst [smem:[#allocation2]] %s2
  // Predicated region
  $region2: #{regressor_forward.1} parent=0 // pred_check
    _
  $region3: #{regressor_forward.1} parent=0 // pred_check_branch
    %10 = sbr.rel (0) target = $region5
  $region4: #{regressor_forward.1} parent=0 // pred_region
    _
  $region5: #{regressor_forward.1} parent=0 // pred_fallthru
    _
  // Predicated region
  $region6: #{regressor_forward.1} parent=0 // pred_check
    _
  $region7: #{regressor_forward.1} parent=0 // pred_check_branch
    %12 = sbr.rel (0) target = $region9
  $region8: #{regressor_forward.1} parent=0 // pred_region
    _
  $region9: #{regressor_forward.1} parent=0 // pred_fallthru
    _
  // Predicated region
  $region10: #{regressor_forward.1} parent=0 // pred_check
    _
  $region11: #{regressor_forward.1} parent=0 // pred_check_branch
    %14 = sbr.rel (0) target = $region13
  $region12: #{regressor_forward.1} parent=0 // pred_region
    _
  $region13: #{regressor_forward.1} parent=0 // pred_fallthru
    _
  %v15 = vld [vmem:[%s0] sm:$0xff]
  %v16 = vld [vmem:[%s0 + $0x8] sm:$0xff]
  %v17 = vld [vmem:[%s0 + $0x10] sm:$0xff]
  %v18 = vld [vmem:[%s0 + $0x18] sm:$0xff]
  %v19 = vld [vmem:[%s0 + $0x20] sm:$0xff]
  %v20 = vld [vmem:[%s0 + $0x28] sm:$0xff]
  %v21 = vld [vmem:[%s0 + $0x30] sm:$0xff]
  %v22 = vld [vmem:[%s0 + $0x38] sm:$0xff]
  %v23 = vld [vmem:[%s0 + $0x40] sm:$0xff]
  %v24 = vld [vmem:[%s0 + $0x48] sm:$0xff]
  %v25 = vld [vmem:[%s0 + $0x50] sm:$0xff]
  %v26 = vld [vmem:[%s0 + $0x58] sm:$0xff]
  %v27 = vld [vmem:[%s0 + $0x60] sm:$0xff]
  %v28 = vld [vmem:[%s0 + $0x68] sm:$0xff]
  %v29 = vld [vmem:[%s0 + $0x70] sm:$0xff]
  %v30 = vld [vmem:[%s0 + $0x78] sm:$0xff]
  %v31 = vld [vmem:[%s0 + $0x80] sm:$0xff]
  %v32 = vld [vmem:[%s0 + $0x88] sm:$0xff]
  %v33 = vld [vmem:[%s0 + $0x90] sm:$0xff]
  %v34 = vld [vmem:[%s0 + $0x98] sm:$0xff]
  %v35 = vld [vmem:[%s0 + $0xa0] sm:$0xff]
  %v36 = vld [vmem:[%s0 + $0xa8] sm:$0xff]
  %v37 = vld [vmem:[%s0 + $0xb0] sm:$0xff]
  %v38 = vld [vmem:[%s0 + $0xb8] sm:$0xff]
  %v39 = vld [vmem:[%s0 + $0xc0] sm:$0xff]
  %v40 = vld [vmem:[%s0 + $0xc8] sm:$0xff]
  %v41 = vld [vmem:[%s0 + $0xd0] sm:$0xff]
  %v42 = vld [vmem:[%s0 + $0xd8] sm:$0xff]
  %v43 = vld [vmem:[%s0 + $0xe0] sm:$0xff]
  %v44 = vld [vmem:[%s0 + $0xe8] sm:$0xff]
  %v45 = vld [vmem:[%s0 + $0xf0] sm:$0xff]
  %v46 = vld [vmem:[%s0 + $0xf8] sm:$0xff]
  %v47 = vld [vmem:[%s0 + $0x100] sm:$0xff]
  %v48 = vld [vmem:[%s0 + $0x108] sm:$0xff]
  %v49 = vld [vmem:[%s0 + $0x110] sm:$0xff]
  %v50 = vld [vmem:[%s0 + $0x118] sm:$0xff]
  %v51 = vld [vmem:[%s0 + $0x120] sm:$0xff]
  %v52 = vld [vmem:[%s0 + $0x128] sm:$0xff]
  %v53 = vld [vmem:[%s0 + $0x130] sm:$0xff]
  %v54 = vld [vmem:[%s0 + $0x138] sm:$0xff]
  %v55 = vld [vmem:[%s0 + $0x140] sm:$0xff]
  %v56 = vld [vmem:[%s0 + $0x148] sm:$0xff]
  %v57 = vld [vmem:[%s0 + $0x150] sm:$0xff]
  %v58 = vld [vmem:[%s0 + $0x158] sm:$0xff]
  %v59 = vld [vmem:[%s0 + $0x160] sm:$0xff]
  %v60 = vld [vmem:[%s0 + $0x168] sm:$0xff]
  %v61 = vld [vmem:[%s0 + $0x170] sm:$0xff]
  %v62 = vld [vmem:[%s0 + $0x178] sm:$0xff]
  %v63 = vld [vmem:[%s0 + $0x180] sm:$0xff]
  %v64 = vld [vmem:[%s0 + $0x188] sm:$0xff]
  %v65 = vld [vmem:[%s0 + $0x190] sm:$0xff]
  %v66 = vld [vmem:[%s0 + $0x198] sm:$0xff]
  %v67 = vld [vmem:[%s0 + $0x1a0] sm:$0xff]
  %v68 = vld [vmem:[%s0 + $0x1a8] sm:$0xff]
  %v69 = vld [vmem:[%s0 + $0x1b0] sm:$0xff]
  %v70 = vld [vmem:[%s0 + $0x1b8] sm:$0xff]
  %v71 = vld [vmem:[%s0 + $0x1c0] sm:$0xff]
  %v72 = vld [vmem:[%s0 + $0x1c8] sm:$0xff]
  %v73 = vld [vmem:[%s0 + $0x1d0] sm:$0xff]
  %v74 = vld [vmem:[%s0 + $0x1d8] sm:$0xff]
  %v75 = vld [vmem:[%s0 + $0x1e0] sm:$0xff]
  %v76 = vld [vmem:[%s0 + $0x1e8] sm:$0xff]
  %v77 = vld [vmem:[%s0 + $0x1f0] sm:$0xff]
  %v78 = vld [vmem:[%s0 + $0x1f8] sm:$0xff]
  %v79 = vld [vmem:[%s0 + $0x200] sm:$0xff]
  %v80 = vld [vmem:[%s0 + $0x208] sm:$0xff]
  %v81 = vld [vmem:[%s0 + $0x210] sm:$0xff]
  %v82 = vld [vmem:[%s0 + $0x218] sm:$0xff]
  %v83 = vld [vmem:[%s0 + $0x220] sm:$0xff]
  %v84 = vld [vmem:[%s0 + $0x228] sm:$0xff]
  %v85 = vld [vmem:[%s0 + $0x230] sm:$0xff]
  %v86 = vld [vmem:[%s0 + $0x238] sm:$0xff]
  %v87 = vld [vmem:[%s0 + $0x240] sm:$0xff]
  %v88 = vld [vmem:[%s0 + $0x248] sm:$0xff]
  %v89 = vld [vmem:[%s0 + $0x250] sm:$0xff]
  %v90 = vld [vmem:[%s0 + $0x258] sm:$0xff]
  %v91 = vld [vmem:[%s0 + $0x260] sm:$0xff]
  %v92 = vld [vmem:[%s0 + $0x268] sm:$0xff]
  %v93 = vld [vmem:[%s0 + $0x270] sm:$0xff]
  %v94 = vld [vmem:[%s0 + $0x278] sm:$0xff]
  %v95 = vld [vmem:[%s0 + $0x280] sm:$0xff]
  %v96 = vld [vmem:[%s0 + $0x288] sm:$0xff]
  %v97 = vld [vmem:[%s0 + $0x290] sm:$0xff]
  %v98 = vld [vmem:[%s0 + $0x298] sm:$0xff]
  %v99 = vld [vmem:[%s0 + $0x2a0] sm:$0xff]
  %v100 = vld [vmem:[%s0 + $0x2a8] sm:$0xff]
  %v101 = vld [vmem:[%s0 + $0x2b0] sm:$0xff]
  %v102 = vld [vmem:[%s0 + $0x2b8] sm:$0xff]
  %v103 = vld [vmem:[%s0 + $0x2c0] sm:$0xff]
  %v104 = vld [vmem:[%s0 + $0x2c8] sm:$0xff]
  %v105 = vld [vmem:[%s0 + $0x2d0] sm:$0xff]
  %v106 = vld [vmem:[%s0 + $0x2d8] sm:$0xff]
  %v107 = vld [vmem:[%s0 + $0x2e0] sm:$0xff]
  %v108 = vld [vmem:[%s0 + $0x2e8] sm:$0xff]
  %v109 = vld [vmem:[%s0 + $0x2f0] sm:$0xff]
  %v110 = vld [vmem:[%s0 + $0x2f8] sm:$0xff]
  %v111 = vld [vmem:[%s0 + $0x300] sm:$0x1]
  %v112 = vld [vmem:[%s0 + $0x308] sm:$0xff]
  %v113 = vld [vmem:[%s0 + $0x310] sm:$0xff]
  %v114 = vld [vmem:[%s0 + $0x318] sm:$0xff]
  %v115 = vld [vmem:[%s0 + $0x320] sm:$0xff]
  %v116 = vld [vmem:[%s0 + $0x328] sm:$0xff]
  %v117 = vld [vmem:[%s0 + $0x330] sm:$0xff]
  %v118 = vld [vmem:[%s0 + $0x338] sm:$0xff]
  %v119 = vld [vmem:[%s0 + $0x340] sm:$0xff]
  %v120 = vld [vmem:[%s0 + $0x348] sm:$0xff]
  %v121 = vld [vmem:[%s0 + $0x350] sm:$0xff]
  %v122 = vld [vmem:[%s0 + $0x358] sm:$0xff]
  %v123 = vld [vmem:[%s0 + $0x360] sm:$0xff]
  %v124 = vld [vmem:[%s0 + $0x368] sm:$0xff]
  %v125 = vld [vmem:[%s0 + $0x370] sm:$0xff]
  %v126 = vld [vmem:[%s0 + $0x378] sm:$0xff]
  %v127 = vld [vmem:[%s0 + $0x380] sm:$0xff]
  %v128 = vld [vmem:[%s0 + $0x388] sm:$0xff]
  %v129 = vld [vmem:[%s0 + $0x390] sm:$0xff]
  %v130 = vld [vmem:[%s0 + $0x398] sm:$0xff]
  %v131 = vld [vmem:[%s0 + $0x3a0] sm:$0xff]
  %v132 = vld [vmem:[%s0 + $0x3a8] sm:$0xff]
  %v133 = vld [vmem:[%s0 + $0x3b0] sm:$0xff]
  %v134 = vld [vmem:[%s0 + $0x3b8] sm:$0xff]
  %v135 = vld [vmem:[%s0 + $0x3c0] sm:$0xff]
  %v136 = vld [vmem:[%s0 + $0x3c8] sm:$0xff]
  %v137 = vld [vmem:[%s0 + $0x3d0] sm:$0xff]
  %v138 = vld [vmem:[%s0 + $0x3d8] sm:$0xff]
  %v139 = vld [vmem:[%s0 + $0x3e0] sm:$0xff]
  %v140 = vld [vmem:[%s0 + $0x3e8] sm:$0xff]
  %v141 = vld [vmem:[%s0 + $0x3f0] sm:$0xff]
  %v142 = vld [vmem:[%s0 + $0x3f8] sm:$0xff]
  %v143 = vld [vmem:[%s0 + $0x400] sm:$0xff]
  %v144 = vld [vmem:[%s0 + $0x408] sm:$0xff]
  %v145 = vld [vmem:[%s0 + $0x410] sm:$0xff]
  %v146 = vld [vmem:[%s0 + $0x418] sm:$0xff]
  %v147 = vld [vmem:[%s0 + $0x420] sm:$0xff]
  %v148 = vld [vmem:[%s0 + $0x428] sm:$0xff]
  %v149 = vld [vmem:[%s0 + $0x430] sm:$0xff]
  %v150 = vld [vmem:[%s0 + $0x438] sm:$0xff]
  %v151 = vld [vmem:[%s0 + $0x440] sm:$0xff]
  %v152 = vld [vmem:[%s0 + $0x448] sm:$0xff]
  %v153 = vld [vmem:[%s0 + $0x450] sm:$0xff]
  %v154 = vld [vmem:[%s0 + $0x458] sm:$0xff]
  %v155 = vld [vmem:[%s0 + $0x460] sm:$0xff]
  %v156 = vld [vmem:[%s0 + $0x468] sm:$0xff]
  %v157 = vld [vmem:[%s0 + $0x470] sm:$0xff]
  %v158 = vld [vmem:[%s0 + $0x478] sm:$0xff]
  %v159 = vld [vmem:[%s0 + $0x480] sm:$0xff]
  %v160 = vld [vmem:[%s0 + $0x488] sm:$0xff]
  %v161 = vld [vmem:[%s0 + $0x490] sm:$0xff]
  %v162 = vld [vmem:[%s0 + $0x498] sm:$0xff]
  %v163 = vld [vmem:[%s0 + $0x4a0] sm:$0xff]
  %v164 = vld [vmem:[%s0 + $0x4a8] sm:$0xff]
  %v165 = vld [vmem:[%s0 + $0x4b0] sm:$0xff]
  %v166 = vld [vmem:[%s0 + $0x4b8] sm:$0xff]
  %v167 = vld [vmem:[%s0 + $0x4c0] sm:$0xff]
  %v168 = vld [vmem:[%s0 + $0x4c8] sm:$0xff]
  %v169 = vld [vmem:[%s0 + $0x4d0] sm:$0xff]
  %v170 = vld [vmem:[%s0 + $0x4d8] sm:$0xff]
  %v171 = vld [vmem:[%s0 + $0x4e0] sm:$0xff]
  %v172 = vld [vmem:[%s0 + $0x4e8] sm:$0xff]
  %v173 = vld [vmem:[%s0 + $0x4f0] sm:$0xff]
  %v174 = vld [vmem:[%s0 + $0x4f8] sm:$0xff]
  %v175 = vld [vmem:[%s0 + $0x500] sm:$0xff]
  %v176 = vld [vmem:[%s0 + $0x508] sm:$0xff]
  %v177 = vld [vmem:[%s0 + $0x510] sm:$0xff]
  %v178 = vld [vmem:[%s0 + $0x518] sm:$0xff]
  %v179 = vld [vmem:[%s0 + $0x520] sm:$0xff]
  %v180 = vld [vmem:[%s0 + $0x528] sm:$0xff]
  %v181 = vld [vmem:[%s0 + $0x530] sm:$0xff]
  %v182 = vld [vmem:[%s0 + $0x538] sm:$0xff]
  %v183 = vld [vmem:[%s0 + $0x540] sm:$0xff]
  %v184 = vld [vmem:[%s0 + $0x548] sm:$0xff]
  %v185 = vld [vmem:[%s0 + $0x550] sm:$0xff]
  %v186 = vld [vmem:[%s0 + $0x558] sm:$0xff]
  %v187 = vld [vmem:[%s0 + $0x560] sm:$0xff]
  %v188 = vld [vmem:[%s0 + $0x568] sm:$0xff]
  %v189 = vld [vmem:[%s0 + $0x570] sm:$0xff]
  %v190 = vld [vmem:[%s0 + $0x578] sm:$0xff]
  %v191 = vld [vmem:[%s0 + $0x580] sm:$0xff]
  %v192 = vld [vmem:[%s0 + $0x588] sm:$0xff]
  %v193 = vld [vmem:[%s0 + $0x590] sm:$0xff]
  %v194 = vld [vmem:[%s0 + $0x598] sm:$0xff]
  %v195 = vld [vmem:[%s0 + $0x5a0] sm:$0xff]
  %v196 = vld [vmem:[%s0 + $0x5a8] sm:$0xff]
  %v197 = vld [vmem:[%s0 + $0x5b0] sm:$0xff]
  %v198 = vld [vmem:[%s0 + $0x5b8] sm:$0xff]
  %v199 = vld [vmem:[%s0 + $0x5c0] sm:$0xff]
  %v200 = vld [vmem:[%s0 + $0x5c8] sm:$0xff]
  %v201 = vld [vmem:[%s0 + $0x5d0] sm:$0xff]
  %v202 = vld [vmem:[%s0 + $0x5d8] sm:$0xff]
  %v203 = vld [vmem:[%s0 + $0x5e0] sm:$0xff]
  %v204 = vld [vmem:[%s0 + $0x5e8] sm:$0xff]
  %v205 = vld [vmem:[%s0 + $0x5f0] sm:$0xff]
  %v206 = vld [vmem:[%s0 + $0x5f8] sm:$0xff]
  %v207 = vld [vmem:[%s0 + $0x600] sm:$0xff]
  %v208 = vld [vmem:[%s0 + $0x608] sm:$0x1]
  %v209 = vld [vmem:[%s1] sm:$0xff]
  %v210 = vld [vmem:[%s1 + $0x8] sm:$0xff]
  %v211 = vld [vmem:[%s1 + $0x10] sm:$0xff]
  %v212 = vld [vmem:[%s1 + $0x18] sm:$0xff]
  %v213 = vld [vmem:[%s1 + $0x20] sm:$0xff]
  %v214 = vld [vmem:[%s1 + $0x28] sm:$0xff]
  %v215 = vld [vmem:[%s1 + $0x30] sm:$0xff]
  %v216 = vld [vmem:[%s1 + $0x38] sm:$0xff]
  %v217 = vld [vmem:[%s1 + $0x40] sm:$0xff]
  %v218 = vld [vmem:[%s1 + $0x48] sm:$0xff]
  %v219 = vld [vmem:[%s1 + $0x50] sm:$0xff]
  %v220 = vld [vmem:[%s1 + $0x58] sm:$0xff]
  %v221 = vld [vmem:[%s1 + $0x60] sm:$0xff]
  %v222 = vld [vmem:[%s1 + $0x68] sm:$0xff]
  %v223 = vld [vmem:[%s1 + $0x70] sm:$0xff]
  %v224 = vld [vmem:[%s1 + $0x78] sm:$0xff]
  %v225 = vld [vmem:[%s1 + $0x80] sm:$0xff]
  %v226 = vld [vmem:[%s1 + $0x88] sm:$0xff]
  %v227 = vld [vmem:[%s1 + $0x90] sm:$0xff]
  %v228 = vld [vmem:[%s1 + $0x98] sm:$0xff]
  %v229 = vld [vmem:[%s1 + $0xa0] sm:$0xff]
  %v230 = vld [vmem:[%s1 + $0xa8] sm:$0xff]
  %v231 = vld [vmem:[%s1 + $0xb0] sm:$0xff]
  %v232 = vld [vmem:[%s1 + $0xb8] sm:$0xff]
  %v233 = vld [vmem:[%s1 + $0xc0] sm:$0xff]
  %v234 = vld [vmem:[%s1 + $0xc8] sm:$0xff]
  %v235 = vld [vmem:[%s1 + $0xd0] sm:$0xff]
  %v236 = vld [vmem:[%s1 + $0xd8] sm:$0xff]
  %v237 = vld [vmem:[%s1 + $0xe0] sm:$0xff]
  %v238 = vld [vmem:[%s1 + $0xe8] sm:$0xff]
  %v239 = vld [vmem:[%s1 + $0xf0] sm:$0xff]
  %v240 = vld [vmem:[%s1 + $0xf8] sm:$0xff]
  %v241 = vld [vmem:[%s1 + $0x100] sm:$0xff]
  %v242 = vld [vmem:[%s1 + $0x108] sm:$0xff]
  %v243 = vld [vmem:[%s1 + $0x110] sm:$0xff]
  %v244 = vld [vmem:[%s1 + $0x118] sm:$0xff]
  %v245 = vld [vmem:[%s1 + $0x120] sm:$0xff]
  %v246 = vld [vmem:[%s1 + $0x128] sm:$0xff]
  %v247 = vld [vmem:[%s1 + $0x130] sm:$0xff]
  %v248 = vld [vmem:[%s1 + $0x138] sm:$0xff]
  %v249 = vld [vmem:[%s1 + $0x140] sm:$0xff]
  %v250 = vld [vmem:[%s1 + $0x148] sm:$0xff]
  %v251 = vld [vmem:[%s1 + $0x150] sm:$0xff]
  %v252 = vld [vmem:[%s1 + $0x158] sm:$0xff]
  %v253 = vld [vmem:[%s1 + $0x160] sm:$0xff]
  %v254 = vld [vmem:[%s1 + $0x168] sm:$0xff]
  %v255 = vld [vmem:[%s1 + $0x170] sm:$0xff]
  %v256 = vld [vmem:[%s1 + $0x178] sm:$0xff]
  %v257 = vld [vmem:[%s1 + $0x180] sm:$0xff]
  %v258 = vld [vmem:[%s1 + $0x188] sm:$0xff]
  %v259 = vld [vmem:[%s1 + $0x190] sm:$0xff]
  %v260 = vld [vmem:[%s1 + $0x198] sm:$0xff]
  %v261 = vld [vmem:[%s1 + $0x1a0] sm:$0xff]
  %v262 = vld [vmem:[%s1 + $0x1a8] sm:$0xff]
  %v263 = vld [vmem:[%s1 + $0x1b0] sm:$0xff]
  %v264 = vld [vmem:[%s1 + $0x1b8] sm:$0xff]
  %v265 = vld [vmem:[%s1 + $0x1c0] sm:$0xff]
  %v266 = vld [vmem:[%s1 + $0x1c8] sm:$0xff]
  %v267 = vld [vmem:[%s1 + $0x1d0] sm:$0xff]
  %v268 = vld [vmem:[%s1 + $0x1d8] sm:$0xff]
  %v269 = vld [vmem:[%s1 + $0x1e0] sm:$0xff]
  %v270 = vld [vmem:[%s1 + $0x1e8] sm:$0xff]
  %v271 = vld [vmem:[%s1 + $0x1f0] sm:$0xff]
  %v272 = vld [vmem:[%s1 + $0x1f8] sm:$0xff]
  %v273 = vld [vmem:[%s1 + $0x200] sm:$0xff]
  %v274 = vld [vmem:[%s1 + $0x208] sm:$0xff]
  %v275 = vld [vmem:[%s1 + $0x210] sm:$0xff]
  %v276 = vld [vmem:[%s1 + $0x218] sm:$0xff]
  %v277 = vld [vmem:[%s1 + $0x220] sm:$0xff]
  %v278 = vld [vmem:[%s1 + $0x228] sm:$0xff]
  %v279 = vld [vmem:[%s1 + $0x230] sm:$0xff]
  %v280 = vld [vmem:[%s1 + $0x238] sm:$0xff]
  %v281 = vld [vmem:[%s1 + $0x240] sm:$0xff]
  %v282 = vld [vmem:[%s1 + $0x248] sm:$0xff]
  %v283 = vld [vmem:[%s1 + $0x250] sm:$0xff]
  %v284 = vld [vmem:[%s1 + $0x258] sm:$0xff]
  %v285 = vld [vmem:[%s1 + $0x260] sm:$0xff]
  %v286 = vld [vmem:[%s1 + $0x268] sm:$0xff]
  %v287 = vld [vmem:[%s1 + $0x270] sm:$0xff]
  %v288 = vld [vmem:[%s1 + $0x278] sm:$0xff]
  %v289 = vld [vmem:[%s1 + $0x280] sm:$0xff]
  %v290 = vld [vmem:[%s1 + $0x288] sm:$0xff]
  %v291 = vld [vmem:[%s1 + $0x290] sm:$0xff]
  %v292 = vld [vmem:[%s1 + $0x298] sm:$0xff]
  %v293 = vld [vmem:[%s1 + $0x2a0] sm:$0xff]
  %v294 = vld [vmem:[%s1 + $0x2a8] sm:$0xff]
  %v295 = vld [vmem:[%s1 + $0x2b0] sm:$0xff]
  %v296 = vld [vmem:[%s1 + $0x2b8] sm:$0xff]
  %v297 = vld [vmem:[%s1 + $0x2c0] sm:$0xff]
  %v298 = vld [vmem:[%s1 + $0x2c8] sm:$0xff]
  %v299 = vld [vmem:[%s1 + $0x2d0] sm:$0xff]
  %v300 = vld [vmem:[%s1 + $0x2d8] sm:$0xff]
  %v301 = vld [vmem:[%s1 + $0x2e0] sm:$0xff]
  %v302 = vld [vmem:[%s1 + $0x2e8] sm:$0xff]
  %v303 = vld [vmem:[%s1 + $0x2f0] sm:$0xff]
  %v304 = vld [vmem:[%s1 + $0x2f8] sm:$0xff]
  %v305 = vld [vmem:[%s1 + $0x300] sm:$0x1]
  %v306 = vmul.f32 %v15, %v209
  %v307 = vmul.f32 %v16, %v210
  %v308 = vmul.f32 %v17, %v211
  %v309 = vmul.f32 %v18, %v212
  %v310 = vmul.f32 %v19, %v213
  %v311 = vmul.f32 %v20, %v214
  %v312 = vmul.f32 %v21, %v215
  %v313 = vmul.f32 %v22, %v216
  %v314 = vmul.f32 %v23, %v217
  %v315 = vmul.f32 %v24, %v218
  %v316 = vmul.f32 %v25, %v219
  %v317 = vmul.f32 %v26, %v220
  %v318 = vmul.f32 %v27, %v221
  %v319 = vmul.f32 %v28, %v222
  %v320 = vmul.f32 %v29, %v223
  %v321 = vmul.f32 %v30, %v224
  %v322 = vmul.f32 %v31, %v225
  %v323 = vmul.f32 %v32, %v226
  %v324 = vmul.f32 %v33, %v227
  %v325 = vmul.f32 %v34, %v228
  %v326 = vmul.f32 %v35, %v229
  %v327 = vmul.f32 %v36, %v230
  %v328 = vmul.f32 %v37, %v231
  %v329 = vmul.f32 %v38, %v232
  %v330 = vmul.f32 %v39, %v233
  %v331 = vmul.f32 %v40, %v234
  %v332 = vmul.f32 %v41, %v235
  %v333 = vmul.f32 %v42, %v236
  %v334 = vmul.f32 %v43, %v237
  %v335 = vmul.f32 %v44, %v238
  %v336 = vmul.f32 %v45, %v239
  %v337 = vmul.f32 %v46, %v240
  %v338 = vmul.f32 %v47, %v241
  %v339 = vmul.f32 %v48, %v242
  %v340 = vmul.f32 %v49, %v243
  %v341 = vmul.f32 %v50, %v244
  %v342 = vmul.f32 %v51, %v245
  %v343 = vmul.f32 %v52, %v246
  %v344 = vmul.f32 %v53, %v247
  %v345 = vmul.f32 %v54, %v248
  %v346 = vmul.f32 %v55, %v249
  %v347 = vmul.f32 %v56, %v250
  %v348 = vmul.f32 %v57, %v251
  %v349 = vmul.f32 %v58, %v252
  %v350 = vmul.f32 %v59, %v253
  %v351 = vmul.f32 %v60, %v254
  %v352 = vmul.f32 %v61, %v255
  %v353 = vmul.f32 %v62, %v256
  %v354 = vmul.f32 %v63, %v257
  %v355 = vmul.f32 %v64, %v258
  %v356 = vmul.f32 %v65, %v259
  %v357 = vmul.f32 %v66, %v260
  %v358 = vmul.f32 %v67, %v261
  %v359 = vmul.f32 %v68, %v262
  %v360 = vmul.f32 %v69, %v263
  %v361 = vmul.f32 %v70, %v264
  %v362 = vmul.f32 %v71, %v265
  %v363 = vmul.f32 %v72, %v266
  %v364 = vmul.f32 %v73, %v267
  %v365 = vmul.f32 %v74, %v268
  %v366 = vmul.f32 %v75, %v269
  %v367 = vmul.f32 %v76, %v270
  %v368 = vmul.f32 %v77, %v271
  %v369 = vmul.f32 %v78, %v272
  %v370 = vmul.f32 %v79, %v273
  %v371 = vmul.f32 %v80, %v274
  %v372 = vmul.f32 %v81, %v275
  %v373 = vmul.f32 %v82, %v276
  %v374 = vmul.f32 %v83, %v277
  %v375 = vmul.f32 %v84, %v278
  %v376 = vmul.f32 %v85, %v279
  %v377 = vmul.f32 %v86, %v280
  %v378 = vmul.f32 %v87, %v281
  %v379 = vmul.f32 %v88, %v282
  %v380 = vmul.f32 %v89, %v283
  %v381 = vmul.f32 %v90, %v284
  %v382 = vmul.f32 %v91, %v285
  %v383 = vmul.f32 %v92, %v286
  %v384 = vmul.f32 %v93, %v287
  %v385 = vmul.f32 %v94, %v288
  %v386 = vmul.f32 %v95, %v289
  %v387 = vmul.f32 %v96, %v290
  %v388 = vmul.f32 %v97, %v291
  %v389 = vmul.f32 %v98, %v292
  %v390 = vmul.f32 %v99, %v293
  %v391 = vmul.f32 %v100, %v294
  %v392 = vmul.f32 %v101, %v295
  %v393 = vmul.f32 %v102, %v296
  %v394 = vmul.f32 %v103, %v297
  %v395 = vmul.f32 %v104, %v298
  %v396 = vmul.f32 %v105, %v299
  %v397 = vmul.f32 %v106, %v300
  %v398 = vmul.f32 %v107, %v301
  %v399 = vmul.f32 %v108, %v302
  %v400 = vmul.f32 %v109, %v303
  %v401 = vmul.f32 %v110, %v304
  %v402 = vmul.f32 %v111, %v305
  %v403 = vmul.f32 %v112, %v209
  %v404 = vmul.f32 %v113, %v210
  %v405 = vmul.f32 %v114, %v211
  %v406 = vmul.f32 %v115, %v212
  %v407 = vmul.f32 %v116, %v213
  %v408 = vmul.f32 %v117, %v214
  %v409 = vmul.f32 %v118, %v215
  %v410 = vmul.f32 %v119, %v216
  %v411 = vmul.f32 %v120, %v217
  %v412 = vmul.f32 %v121, %v218
  %v413 = vmul.f32 %v122, %v219
  %v414 = vmul.f32 %v123, %v220
  %v415 = vmul.f32 %v124, %v221
  %v416 = vmul.f32 %v125, %v222
  %v417 = vmul.f32 %v126, %v223
  %v418 = vmul.f32 %v127, %v224
  %v419 = vmul.f32 %v128, %v225
  %v420 = vmul.f32 %v129, %v226
  %v421 = vmul.f32 %v130, %v227
  %v422 = vmul.f32 %v131, %v228
  %v423 = vmul.f32 %v132, %v229
  %v424 = vmul.f32 %v133, %v230
  %v425 = vmul.f32 %v134, %v231
  %v426 = vmul.f32 %v135, %v232
  %v427 = vmul.f32 %v136, %v233
  %v428 = vmul.f32 %v137, %v234
  %v429 = vmul.f32 %v138, %v235
  %v430 = vmul.f32 %v139, %v236
  %v431 = vmul.f32 %v140, %v237
  %v432 = vmul.f32 %v141, %v238
  %v433 = vmul.f32 %v142, %v239
  %v434 = vmul.f32 %v143, %v240
  %v435 = vmul.f32 %v144, %v241
  %v436 = vmul.f32 %v145, %v242
  %v437 = vmul.f32 %v146, %v243
  %v438 = vmul.f32 %v147, %v244
  %v439 = vmul.f32 %v148, %v245
  %v440 = vmul.f32 %v149, %v246
  %v441 = vmul.f32 %v150, %v247
  %v442 = vmul.f32 %v151, %v248
  %v443 = vmul.f32 %v152, %v249
  %v444 = vmul.f32 %v153, %v250
  %v445 = vmul.f32 %v154, %v251
  %v446 = vmul.f32 %v155, %v252
  %v447 = vmul.f32 %v156, %v253
  %v448 = vmul.f32 %v157, %v254
  %v449 = vmul.f32 %v158, %v255
  %v450 = vmul.f32 %v159, %v256
  %v451 = vmul.f32 %v160, %v257
  %v452 = vmul.f32 %v161, %v258
  %v453 = vmul.f32 %v162, %v259
  %v454 = vmul.f32 %v163, %v260
  %v455 = vmul.f32 %v164, %v261
  %v456 = vmul.f32 %v165, %v262
  %v457 = vmul.f32 %v166, %v263
  %v458 = vmul.f32 %v167, %v264
  %v459 = vmul.f32 %v168, %v265
  %v460 = vmul.f32 %v169, %v266
  %v461 = vmul.f32 %v170, %v267
  %v462 = vmul.f32 %v171, %v268
  %v463 = vmul.f32 %v172, %v269
  %v464 = vmul.f32 %v173, %v270
  %v465 = vmul.f32 %v174, %v271
  %v466 = vmul.f32 %v175, %v272
  %v467 = vmul.f32 %v176, %v273
  %v468 = vmul.f32 %v177, %v274
  %v469 = vmul.f32 %v178, %v275
  %v470 = vmul.f32 %v179, %v276
  %v471 = vmul.f32 %v180, %v277
  %v472 = vmul.f32 %v181, %v278
  %v473 = vmul.f32 %v182, %v279
  %v474 = vmul.f32 %v183, %v280
  %v475 = vmul.f32 %v184, %v281
  %v476 = vmul.f32 %v185, %v282
  %v477 = vmul.f32 %v186, %v283
  %v478 = vmul.f32 %v187, %v284
  %v479 = vmul.f32 %v188, %v285
  %v480 = vmul.f32 %v189, %v286
  %v481 = vmul.f32 %v190, %v287
  %v482 = vmul.f32 %v191, %v288
  %v483 = vmul.f32 %v192, %v289
  %v484 = vmul.f32 %v193, %v290
  %v485 = vmul.f32 %v194, %v291
  %v486 = vmul.f32 %v195, %v292
  %v487 = vmul.f32 %v196, %v293
  %v488 = vmul.f32 %v197, %v294
  %v489 = vmul.f32 %v198, %v295
  %v490 = vmul.f32 %v199, %v296
  %v491 = vmul.f32 %v200, %v297
  %v492 = vmul.f32 %v201, %v298
  %v493 = vmul.f32 %v202, %v299
  %v494 = vmul.f32 %v203, %v300
  %v495 = vmul.f32 %v204, %v301
  %v496 = vmul.f32 %v205, %v302
  %v497 = vmul.f32 %v206, %v303
  %v498 = vmul.f32 %v207, %v304
  %v499 = vmul.f32 %v208, %v305
  %vm500 = vcmask 990208
  %v501 = vsel %vm500, %v306, 0.0
  %502 = vadd.xlane.f32.xlu0 %v501
  %v503 = vpop.xlane.xlu0 %502
  %v504 = vsel %vm500, %v307, 0.0
  %505 = vadd.xlane.f32.xlu0 %v504
  %v506 = vpop.xlane.xlu0 %505
  %v507 = vsel %vm500, %v308, 0.0
  %508 = vadd.xlane.f32.xlu0 %v507
  %v509 = vpop.xlane.xlu0 %508
  %v510 = vsel %vm500, %v309, 0.0
  %511 = vadd.xlane.f32.xlu0 %v510
  %v512 = vpop.xlane.xlu0 %511
  %v513 = vsel %vm500, %v310, 0.0
  %514 = vadd.xlane.f32.xlu0 %v513
  %v515 = vpop.xlane.xlu0 %514
  %v516 = vsel %vm500, %v311, 0.0
  %517 = vadd.xlane.f32.xlu0 %v516
  %v518 = vpop.xlane.xlu0 %517
  %v519 = vsel %vm500, %v312, 0.0
  %520 = vadd.xlane.f32.xlu0 %v519
  %v521 = vpop.xlane.xlu0 %520
  %v522 = vsel %vm500, %v313, 0.0
  %523 = vadd.xlane.f32.xlu0 %v522
  %v524 = vpop.xlane.xlu0 %523
  %v525 = vsel %vm500, %v314, 0.0
  %526 = vadd.xlane.f32.xlu0 %v525
  %v527 = vpop.xlane.xlu0 %526
  %v528 = vsel %vm500, %v315, 0.0
  %529 = vadd.xlane.f32.xlu0 %v528
  %v530 = vpop.xlane.xlu0 %529
  %v531 = vsel %vm500, %v316, 0.0
  %532 = vadd.xlane.f32.xlu0 %v531
  %v533 = vpop.xlane.xlu0 %532
  %v534 = vsel %vm500, %v317, 0.0
  %535 = vadd.xlane.f32.xlu0 %v534
  %v536 = vpop.xlane.xlu0 %535
  %v537 = vsel %vm500, %v318, 0.0
  %538 = vadd.xlane.f32.xlu0 %v537
  %v539 = vpop.xlane.xlu0 %538
  %v540 = vsel %vm500, %v319, 0.0
  %541 = vadd.xlane.f32.xlu0 %v540
  %v542 = vpop.xlane.xlu0 %541
  %v543 = vsel %vm500, %v320, 0.0
  %544 = vadd.xlane.f32.xlu0 %v543
  %v545 = vpop.xlane.xlu0 %544
  %v546 = vsel %vm500, %v321, 0.0
  %547 = vadd.xlane.f32.xlu0 %v546
  %v548 = vpop.xlane.xlu0 %547
  %v549 = vsel %vm500, %v322, 0.0
  %550 = vadd.xlane.f32.xlu0 %v549
  %v551 = vpop.xlane.xlu0 %550
  %v552 = vsel %vm500, %v323, 0.0
  %553 = vadd.xlane.f32.xlu0 %v552
  %v554 = vpop.xlane.xlu0 %553
  %v555 = vsel %vm500, %v324, 0.0
  %556 = vadd.xlane.f32.xlu0 %v555
  %v557 = vpop.xlane.xlu0 %556
  %v558 = vsel %vm500, %v325, 0.0
  %559 = vadd.xlane.f32.xlu0 %v558
  %v560 = vpop.xlane.xlu0 %559
  %v561 = vsel %vm500, %v326, 0.0
  %562 = vadd.xlane.f32.xlu0 %v561
  %v563 = vpop.xlane.xlu0 %562
  %v564 = vsel %vm500, %v327, 0.0
  %565 = vadd.xlane.f32.xlu0 %v564
  %v566 = vpop.xlane.xlu0 %565
  %v567 = vsel %vm500, %v328, 0.0
  %568 = vadd.xlane.f32.xlu0 %v567
  %v569 = vpop.xlane.xlu0 %568
  %v570 = vsel %vm500, %v329, 0.0
  %571 = vadd.xlane.f32.xlu0 %v570
  %v572 = vpop.xlane.xlu0 %571
  %v573 = vsel %vm500, %v330, 0.0
  %574 = vadd.xlane.f32.xlu0 %v573
  %v575 = vpop.xlane.xlu0 %574
  %v576 = vsel %vm500, %v331, 0.0
  %577 = vadd.xlane.f32.xlu0 %v576
  %v578 = vpop.xlane.xlu0 %577
  %v579 = vsel %vm500, %v332, 0.0
  %580 = vadd.xlane.f32.xlu0 %v579
  %v581 = vpop.xlane.xlu0 %580
  %v582 = vsel %vm500, %v333, 0.0
  %583 = vadd.xlane.f32.xlu0 %v582
  %v584 = vpop.xlane.xlu0 %583
  %v585 = vsel %vm500, %v334, 0.0
  %586 = vadd.xlane.f32.xlu0 %v585
  %v587 = vpop.xlane.xlu0 %586
  %v588 = vsel %vm500, %v335, 0.0
  %589 = vadd.xlane.f32.xlu0 %v588
  %v590 = vpop.xlane.xlu0 %589
  %v591 = vsel %vm500, %v336, 0.0
  %592 = vadd.xlane.f32.xlu0 %v591
  %v593 = vpop.xlane.xlu0 %592
  %v594 = vsel %vm500, %v337, 0.0
  %595 = vadd.xlane.f32.xlu0 %v594
  %v596 = vpop.xlane.xlu0 %595
  %v597 = vsel %vm500, %v338, 0.0
  %598 = vadd.xlane.f32.xlu0 %v597
  %v599 = vpop.xlane.xlu0 %598
  %v600 = vsel %vm500, %v339, 0.0
  %601 = vadd.xlane.f32.xlu0 %v600
  %v602 = vpop.xlane.xlu0 %601
  %v603 = vsel %vm500, %v340, 0.0
  %604 = vadd.xlane.f32.xlu0 %v603
  %v605 = vpop.xlane.xlu0 %604
  %v606 = vsel %vm500, %v341, 0.0
  %607 = vadd.xlane.f32.xlu0 %v606
  %v608 = vpop.xlane.xlu0 %607
  %v609 = vsel %vm500, %v342, 0.0
  %610 = vadd.xlane.f32.xlu0 %v609
  %v611 = vpop.xlane.xlu0 %610
  %v612 = vsel %vm500, %v343, 0.0
  %613 = vadd.xlane.f32.xlu0 %v612
  %v614 = vpop.xlane.xlu0 %613
  %v615 = vsel %vm500, %v344, 0.0
  %616 = vadd.xlane.f32.xlu0 %v615
  %v617 = vpop.xlane.xlu0 %616
  %v618 = vsel %vm500, %v345, 0.0
  %619 = vadd.xlane.f32.xlu0 %v618
  %v620 = vpop.xlane.xlu0 %619
  %v621 = vsel %vm500, %v346, 0.0
  %622 = vadd.xlane.f32.xlu0 %v621
  %v623 = vpop.xlane.xlu0 %622
  %v624 = vsel %vm500, %v347, 0.0
  %625 = vadd.xlane.f32.xlu0 %v624
  %v626 = vpop.xlane.xlu0 %625
  %v627 = vsel %vm500, %v348, 0.0
  %628 = vadd.xlane.f32.xlu0 %v627
  %v629 = vpop.xlane.xlu0 %628
  %v630 = vsel %vm500, %v349, 0.0
  %631 = vadd.xlane.f32.xlu0 %v630
  %v632 = vpop.xlane.xlu0 %631
  %v633 = vsel %vm500, %v350, 0.0
  %634 = vadd.xlane.f32.xlu0 %v633
  %v635 = vpop.xlane.xlu0 %634
  %v636 = vsel %vm500, %v351, 0.0
  %637 = vadd.xlane.f32.xlu0 %v636
  %v638 = vpop.xlane.xlu0 %637
  %v639 = vsel %vm500, %v352, 0.0
  %640 = vadd.xlane.f32.xlu0 %v639
  %v641 = vpop.xlane.xlu0 %640
  %v642 = vsel %vm500, %v353, 0.0
  %643 = vadd.xlane.f32.xlu0 %v642
  %v644 = vpop.xlane.xlu0 %643
  %v645 = vsel %vm500, %v354, 0.0
  %646 = vadd.xlane.f32.xlu0 %v645
  %v647 = vpop.xlane.xlu0 %646
  %v648 = vsel %vm500, %v355, 0.0
  %649 = vadd.xlane.f32.xlu0 %v648
  %v650 = vpop.xlane.xlu0 %649
  %v651 = vsel %vm500, %v356, 0.0
  %652 = vadd.xlane.f32.xlu0 %v651
  %v653 = vpop.xlane.xlu0 %652
  %v654 = vsel %vm500, %v357, 0.0
  %655 = vadd.xlane.f32.xlu0 %v654
  %v656 = vpop.xlane.xlu0 %655
  %v657 = vsel %vm500, %v358, 0.0
  %658 = vadd.xlane.f32.xlu0 %v657
  %v659 = vpop.xlane.xlu0 %658
  %v660 = vsel %vm500, %v359, 0.0
  %661 = vadd.xlane.f32.xlu0 %v660
  %v662 = vpop.xlane.xlu0 %661
  %v663 = vsel %vm500, %v360, 0.0
  %664 = vadd.xlane.f32.xlu0 %v663
  %v665 = vpop.xlane.xlu0 %664
  %v666 = vsel %vm500, %v361, 0.0
  %667 = vadd.xlane.f32.xlu0 %v666
  %v668 = vpop.xlane.xlu0 %667
  %v669 = vsel %vm500, %v362, 0.0
  %670 = vadd.xlane.f32.xlu0 %v669
  %v671 = vpop.xlane.xlu0 %670
  %v672 = vsel %vm500, %v363, 0.0
  %673 = vadd.xlane.f32.xlu0 %v672
  %v674 = vpop.xlane.xlu0 %673
  %v675 = vsel %vm500, %v364, 0.0
  %676 = vadd.xlane.f32.xlu0 %v675
  %v677 = vpop.xlane.xlu0 %676
  %v678 = vsel %vm500, %v365, 0.0
  %679 = vadd.xlane.f32.xlu0 %v678
  %v680 = vpop.xlane.xlu0 %679
  %v681 = vsel %vm500, %v366, 0.0
  %682 = vadd.xlane.f32.xlu0 %v681
  %v683 = vpop.xlane.xlu0 %682
  %v684 = vsel %vm500, %v367, 0.0
  %685 = vadd.xlane.f32.xlu0 %v684
  %v686 = vpop.xlane.xlu0 %685
  %v687 = vsel %vm500, %v368, 0.0
  %688 = vadd.xlane.f32.xlu0 %v687
  %v689 = vpop.xlane.xlu0 %688
  %v690 = vsel %vm500, %v369, 0.0
  %691 = vadd.xlane.f32.xlu0 %v690
  %v692 = vpop.xlane.xlu0 %691
  %v693 = vsel %vm500, %v370, 0.0
  %694 = vadd.xlane.f32.xlu0 %v693
  %v695 = vpop.xlane.xlu0 %694
  %v696 = vsel %vm500, %v371, 0.0
  %697 = vadd.xlane.f32.xlu0 %v696
  %v698 = vpop.xlane.xlu0 %697
  %v699 = vsel %vm500, %v372, 0.0
  %700 = vadd.xlane.f32.xlu0 %v699
  %v701 = vpop.xlane.xlu0 %700
  %v702 = vsel %vm500, %v373, 0.0
  %703 = vadd.xlane.f32.xlu0 %v702
  %v704 = vpop.xlane.xlu0 %703
  %v705 = vsel %vm500, %v374, 0.0
  %706 = vadd.xlane.f32.xlu0 %v705
  %v707 = vpop.xlane.xlu0 %706
  %v708 = vsel %vm500, %v375, 0.0
  %709 = vadd.xlane.f32.xlu0 %v708
  %v710 = vpop.xlane.xlu0 %709
  %v711 = vsel %vm500, %v376, 0.0
  %712 = vadd.xlane.f32.xlu0 %v711
  %v713 = vpop.xlane.xlu0 %712
  %v714 = vsel %vm500, %v377, 0.0
  %715 = vadd.xlane.f32.xlu0 %v714
  %v716 = vpop.xlane.xlu0 %715
  %v717 = vsel %vm500, %v378, 0.0
  %718 = vadd.xlane.f32.xlu0 %v717
  %v719 = vpop.xlane.xlu0 %718
  %v720 = vsel %vm500, %v379, 0.0
  %721 = vadd.xlane.f32.xlu0 %v720
  %v722 = vpop.xlane.xlu0 %721
  %v723 = vsel %vm500, %v380, 0.0
  %724 = vadd.xlane.f32.xlu0 %v723
  %v725 = vpop.xlane.xlu0 %724
  %v726 = vsel %vm500, %v381, 0.0
  %727 = vadd.xlane.f32.xlu0 %v726
  %v728 = vpop.xlane.xlu0 %727
  %v729 = vsel %vm500, %v382, 0.0
  %730 = vadd.xlane.f32.xlu0 %v729
  %v731 = vpop.xlane.xlu0 %730
  %v732 = vsel %vm500, %v383, 0.0
  %733 = vadd.xlane.f32.xlu0 %v732
  %v734 = vpop.xlane.xlu0 %733
  %v735 = vsel %vm500, %v384, 0.0
  %736 = vadd.xlane.f32.xlu0 %v735
  %v737 = vpop.xlane.xlu0 %736
  %v738 = vsel %vm500, %v385, 0.0
  %739 = vadd.xlane.f32.xlu0 %v738
  %v740 = vpop.xlane.xlu0 %739
  %v741 = vsel %vm500, %v386, 0.0
  %742 = vadd.xlane.f32.xlu0 %v741
  %v743 = vpop.xlane.xlu0 %742
  %v744 = vsel %vm500, %v387, 0.0
  %745 = vadd.xlane.f32.xlu0 %v744
  %v746 = vpop.xlane.xlu0 %745
  %v747 = vsel %vm500, %v388, 0.0
  %748 = vadd.xlane.f32.xlu0 %v747
  %v749 = vpop.xlane.xlu0 %748
  %v750 = vsel %vm500, %v389, 0.0
  %751 = vadd.xlane.f32.xlu0 %v750
  %v752 = vpop.xlane.xlu0 %751
  %v753 = vsel %vm500, %v390, 0.0
  %754 = vadd.xlane.f32.xlu0 %v753
  %v755 = vpop.xlane.xlu0 %754
  %v756 = vsel %vm500, %v391, 0.0
  %757 = vadd.xlane.f32.xlu0 %v756
  %v758 = vpop.xlane.xlu0 %757
  %v759 = vsel %vm500, %v392, 0.0
  %760 = vadd.xlane.f32.xlu0 %v759
  %v761 = vpop.xlane.xlu0 %760
  %v762 = vsel %vm500, %v393, 0.0
  %763 = vadd.xlane.f32.xlu0 %v762
  %v764 = vpop.xlane.xlu0 %763
  %v765 = vsel %vm500, %v394, 0.0
  %766 = vadd.xlane.f32.xlu0 %v765
  %v767 = vpop.xlane.xlu0 %766
  %v768 = vsel %vm500, %v395, 0.0
  %769 = vadd.xlane.f32.xlu0 %v768
  %v770 = vpop.xlane.xlu0 %769
  %v771 = vsel %vm500, %v396, 0.0
  %772 = vadd.xlane.f32.xlu0 %v771
  %v773 = vpop.xlane.xlu0 %772
  %v774 = vsel %vm500, %v397, 0.0
  %775 = vadd.xlane.f32.xlu0 %v774
  %v776 = vpop.xlane.xlu0 %775
  %v777 = vsel %vm500, %v398, 0.0
  %778 = vadd.xlane.f32.xlu0 %v777
  %v779 = vpop.xlane.xlu0 %778
  %v780 = vsel %vm500, %v399, 0.0
  %781 = vadd.xlane.f32.xlu0 %v780
  %v782 = vpop.xlane.xlu0 %781
  %v783 = vsel %vm500, %v400, 0.0
  %784 = vadd.xlane.f32.xlu0 %v783
  %v785 = vpop.xlane.xlu0 %784
  %v786 = vsel %vm500, %v401, 0.0
  %787 = vadd.xlane.f32.xlu0 %v786
  %v788 = vpop.xlane.xlu0 %787
  %vm789 = vcmask 983040
  %v790 = vsel %vm789, %v402, 0.0
  %791 = vadd.xlane.f32.xlu0 %v790
  %v792 = vpop.xlane.xlu0 %791
  %v793 = vsel %vm500, %v403, 0.0
  %794 = vadd.xlane.f32.xlu0 %v793
  %v795 = vpop.xlane.xlu0 %794
  %v796 = vsel %vm500, %v404, 0.0
  %797 = vadd.xlane.f32.xlu0 %v796
  %v798 = vpop.xlane.xlu0 %797
  %v799 = vsel %vm500, %v405, 0.0
  %800 = vadd.xlane.f32.xlu0 %v799
  %v801 = vpop.xlane.xlu0 %800
  %v802 = vsel %vm500, %v406, 0.0
  %803 = vadd.xlane.f32.xlu0 %v802
  %v804 = vpop.xlane.xlu0 %803
  %v805 = vsel %vm500, %v407, 0.0
  %806 = vadd.xlane.f32.xlu0 %v805
  %v807 = vpop.xlane.xlu0 %806
  %v808 = vsel %vm500, %v408, 0.0
  %809 = vadd.xlane.f32.xlu0 %v808
  %v810 = vpop.xlane.xlu0 %809
  %v811 = vsel %vm500, %v409, 0.0
  %812 = vadd.xlane.f32.xlu0 %v811
  %v813 = vpop.xlane.xlu0 %812
  %v814 = vsel %vm500, %v410, 0.0
  %815 = vadd.xlane.f32.xlu0 %v814
  %v816 = vpop.xlane.xlu0 %815
  %v817 = vsel %vm500, %v411, 0.0
  %818 = vadd.xlane.f32.xlu0 %v817
  %v819 = vpop.xlane.xlu0 %818
  %v820 = vsel %vm500, %v412, 0.0
  %821 = vadd.xlane.f32.xlu0 %v820
  %v822 = vpop.xlane.xlu0 %821
  %v823 = vsel %vm500, %v413, 0.0
  %824 = vadd.xlane.f32.xlu0 %v823
  %v825 = vpop.xlane.xlu0 %824
  %v826 = vsel %vm500, %v414, 0.0
  %827 = vadd.xlane.f32.xlu0 %v826
  %v828 = vpop.xlane.xlu0 %827
  %v829 = vsel %vm500, %v415, 0.0
  %830 = vadd.xlane.f32.xlu0 %v829
  %v831 = vpop.xlane.xlu0 %830
  %v832 = vsel %vm500, %v416, 0.0
  %833 = vadd.xlane.f32.xlu0 %v832
  %v834 = vpop.xlane.xlu0 %833
  %v835 = vsel %vm500, %v417, 0.0
  %836 = vadd.xlane.f32.xlu0 %v835
  %v837 = vpop.xlane.xlu0 %836
  %v838 = vsel %vm500, %v418, 0.0
  %839 = vadd.xlane.f32.xlu0 %v838
  %v840 = vpop.xlane.xlu0 %839
  %v841 = vsel %vm500, %v419, 0.0
  %842 = vadd.xlane.f32.xlu0 %v841
  %v843 = vpop.xlane.xlu0 %842
  %v844 = vsel %vm500, %v420, 0.0
  %845 = vadd.xlane.f32.xlu0 %v844
  %v846 = vpop.xlane.xlu0 %845
  %v847 = vsel %vm500, %v421, 0.0
  %848 = vadd.xlane.f32.xlu0 %v847
  %v849 = vpop.xlane.xlu0 %848
  %v850 = vsel %vm500, %v422, 0.0
  %851 = vadd.xlane.f32.xlu0 %v850
  %v852 = vpop.xlane.xlu0 %851
  %v853 = vsel %vm500, %v423, 0.0
  %854 = vadd.xlane.f32.xlu0 %v853
  %v855 = vpop.xlane.xlu0 %854
  %v856 = vsel %vm500, %v424, 0.0
  %857 = vadd.xlane.f32.xlu0 %v856
  %v858 = vpop.xlane.xlu0 %857
  %v859 = vsel %vm500, %v425, 0.0
  %860 = vadd.xlane.f32.xlu0 %v859
  %v861 = vpop.xlane.xlu0 %860
  %v862 = vsel %vm500, %v426, 0.0
  %863 = vadd.xlane.f32.xlu0 %v862
  %v864 = vpop.xlane.xlu0 %863
  %v865 = vsel %vm500, %v427, 0.0
  %866 = vadd.xlane.f32.xlu0 %v865
  %v867 = vpop.xlane.xlu0 %866
  %v868 = vsel %vm500, %v428, 0.0
  %869 = vadd.xlane.f32.xlu0 %v868
  %v870 = vpop.xlane.xlu0 %869
  %v871 = vsel %vm500, %v429, 0.0
  %872 = vadd.xlane.f32.xlu0 %v871
  %v873 = vpop.xlane.xlu0 %872
  %v874 = vsel %vm500, %v430, 0.0
  %875 = vadd.xlane.f32.xlu0 %v874
  %v876 = vpop.xlane.xlu0 %875
  %v877 = vsel %vm500, %v431, 0.0
  %878 = vadd.xlane.f32.xlu0 %v877
  %v879 = vpop.xlane.xlu0 %878
  %v880 = vsel %vm500, %v432, 0.0
  %881 = vadd.xlane.f32.xlu0 %v880
  %v882 = vpop.xlane.xlu0 %881
  %v883 = vsel %vm500, %v433, 0.0
  %884 = vadd.xlane.f32.xlu0 %v883
  %v885 = vpop.xlane.xlu0 %884
  %v886 = vsel %vm500, %v434, 0.0
  %887 = vadd.xlane.f32.xlu0 %v886
  %v888 = vpop.xlane.xlu0 %887
  %v889 = vsel %vm500, %v435, 0.0
  %890 = vadd.xlane.f32.xlu0 %v889
  %v891 = vpop.xlane.xlu0 %890
  %v892 = vsel %vm500, %v436, 0.0
  %893 = vadd.xlane.f32.xlu0 %v892
  %v894 = vpop.xlane.xlu0 %893
  %v895 = vsel %vm500, %v437, 0.0
  %896 = vadd.xlane.f32.xlu0 %v895
  %v897 = vpop.xlane.xlu0 %896
  %v898 = vsel %vm500, %v438, 0.0
  %899 = vadd.xlane.f32.xlu0 %v898
  %v900 = vpop.xlane.xlu0 %899
  %v901 = vsel %vm500, %v439, 0.0
  %902 = vadd.xlane.f32.xlu0 %v901
  %v903 = vpop.xlane.xlu0 %902
  %v904 = vsel %vm500, %v440, 0.0
  %905 = vadd.xlane.f32.xlu0 %v904
  %v906 = vpop.xlane.xlu0 %905
  %v907 = vsel %vm500, %v441, 0.0
  %908 = vadd.xlane.f32.xlu0 %v907
  %v909 = vpop.xlane.xlu0 %908
  %v910 = vsel %vm500, %v442, 0.0
  %911 = vadd.xlane.f32.xlu0 %v910
  %v912 = vpop.xlane.xlu0 %911
  %v913 = vsel %vm500, %v443, 0.0
  %914 = vadd.xlane.f32.xlu0 %v913
  %v915 = vpop.xlane.xlu0 %914
  %v916 = vsel %vm500, %v444, 0.0
  %917 = vadd.xlane.f32.xlu0 %v916
  %v918 = vpop.xlane.xlu0 %917
  %v919 = vsel %vm500, %v445, 0.0
  %920 = vadd.xlane.f32.xlu0 %v919
  %v921 = vpop.xlane.xlu0 %920
  %v922 = vsel %vm500, %v446, 0.0
  %923 = vadd.xlane.f32.xlu0 %v922
  %v924 = vpop.xlane.xlu0 %923
  %v925 = vsel %vm500, %v447, 0.0
  %926 = vadd.xlane.f32.xlu0 %v925
  %v927 = vpop.xlane.xlu0 %926
  %v928 = vsel %vm500, %v448, 0.0
  %929 = vadd.xlane.f32.xlu0 %v928
  %v930 = vpop.xlane.xlu0 %929
  %v931 = vsel %vm500, %v449, 0.0
  %932 = vadd.xlane.f32.xlu0 %v931
  %v933 = vpop.xlane.xlu0 %932
  %v934 = vsel %vm500, %v450, 0.0
  %935 = vadd.xlane.f32.xlu0 %v934
  %v936 = vpop.xlane.xlu0 %935
  %v937 = vsel %vm500, %v451, 0.0
  %938 = vadd.xlane.f32.xlu0 %v937
  %v939 = vpop.xlane.xlu0 %938
  %v940 = vsel %vm500, %v452, 0.0
  %941 = vadd.xlane.f32.xlu0 %v940
  %v942 = vpop.xlane.xlu0 %941
  %v943 = vsel %vm500, %v453, 0.0
  %944 = vadd.xlane.f32.xlu0 %v943
  %v945 = vpop.xlane.xlu0 %944
  %v946 = vsel %vm500, %v454, 0.0
  %947 = vadd.xlane.f32.xlu0 %v946
  %v948 = vpop.xlane.xlu0 %947
  %v949 = vsel %vm500, %v455, 0.0
  %950 = vadd.xlane.f32.xlu0 %v949
  %v951 = vpop.xlane.xlu0 %950
  %v952 = vsel %vm500, %v456, 0.0
  %953 = vadd.xlane.f32.xlu0 %v952
  %v954 = vpop.xlane.xlu0 %953
  %v955 = vsel %vm500, %v457, 0.0
  %956 = vadd.xlane.f32.xlu0 %v955
  %v957 = vpop.xlane.xlu0 %956
  %v958 = vsel %vm500, %v458, 0.0
  %959 = vadd.xlane.f32.xlu0 %v958
  %v960 = vpop.xlane.xlu0 %959
  %v961 = vsel %vm500, %v459, 0.0
  %962 = vadd.xlane.f32.xlu0 %v961
  %v963 = vpop.xlane.xlu0 %962
  %v964 = vsel %vm500, %v460, 0.0
  %965 = vadd.xlane.f32.xlu0 %v964
  %v966 = vpop.xlane.xlu0 %965
  %v967 = vsel %vm500, %v461, 0.0
  %968 = vadd.xlane.f32.xlu0 %v967
  %v969 = vpop.xlane.xlu0 %968
  %v970 = vsel %vm500, %v462, 0.0
  %971 = vadd.xlane.f32.xlu0 %v970
  %v972 = vpop.xlane.xlu0 %971
  %v973 = vsel %vm500, %v463, 0.0
  %974 = vadd.xlane.f32.xlu0 %v973
  %v975 = vpop.xlane.xlu0 %974
  %v976 = vsel %vm500, %v464, 0.0
  %977 = vadd.xlane.f32.xlu0 %v976
  %v978 = vpop.xlane.xlu0 %977
  %v979 = vsel %vm500, %v465, 0.0
  %980 = vadd.xlane.f32.xlu0 %v979
  %v981 = vpop.xlane.xlu0 %980
  %v982 = vsel %vm500, %v466, 0.0
  %983 = vadd.xlane.f32.xlu0 %v982
  %v984 = vpop.xlane.xlu0 %983
  %v985 = vsel %vm500, %v467, 0.0
  %986 = vadd.xlane.f32.xlu0 %v985
  %v987 = vpop.xlane.xlu0 %986
  %v988 = vsel %vm500, %v468, 0.0
  %989 = vadd.xlane.f32.xlu0 %v988
  %v990 = vpop.xlane.xlu0 %989
  %v991 = vsel %vm500, %v469, 0.0
  %992 = vadd.xlane.f32.xlu0 %v991
  %v993 = vpop.xlane.xlu0 %992
  %v994 = vsel %vm500, %v470, 0.0
  %995 = vadd.xlane.f32.xlu0 %v994
  %v996 = vpop.xlane.xlu0 %995
  %v997 = vsel %vm500, %v471, 0.0
  %998 = vadd.xlane.f32.xlu0 %v997
  %v999 = vpop.xlane.xlu0 %998
  %v1000 = vsel %vm500, %v472, 0.0
  %1001 = vadd.xlane.f32.xlu0 %v1000
  %v1002 = vpop.xlane.xlu0 %1001
  %v1003 = vsel %vm500, %v473, 0.0
  %1004 = vadd.xlane.f32.xlu0 %v1003
  %v1005 = vpop.xlane.xlu0 %1004
  %v1006 = vsel %vm500, %v474, 0.0
  %1007 = vadd.xlane.f32.xlu0 %v1006
  %v1008 = vpop.xlane.xlu0 %1007
  %v1009 = vsel %vm500, %v475, 0.0
  %1010 = vadd.xlane.f32.xlu0 %v1009
  %v1011 = vpop.xlane.xlu0 %1010
  %v1012 = vsel %vm500, %v476, 0.0
  %1013 = vadd.xlane.f32.xlu0 %v1012
  %v1014 = vpop.xlane.xlu0 %1013
  %v1015 = vsel %vm500, %v477, 0.0
  %1016 = vadd.xlane.f32.xlu0 %v1015
  %v1017 = vpop.xlane.xlu0 %1016
  %v1018 = vsel %vm500, %v478, 0.0
  %1019 = vadd.xlane.f32.xlu0 %v1018
  %v1020 = vpop.xlane.xlu0 %1019
  %v1021 = vsel %vm500, %v479, 0.0
  %1022 = vadd.xlane.f32.xlu0 %v1021
  %v1023 = vpop.xlane.xlu0 %1022
  %v1024 = vsel %vm500, %v480, 0.0
  %1025 = vadd.xlane.f32.xlu0 %v1024
  %v1026 = vpop.xlane.xlu0 %1025
  %v1027 = vsel %vm500, %v481, 0.0
  %1028 = vadd.xlane.f32.xlu0 %v1027
  %v1029 = vpop.xlane.xlu0 %1028
  %v1030 = vsel %vm500, %v482, 0.0
  %1031 = vadd.xlane.f32.xlu0 %v1030
  %v1032 = vpop.xlane.xlu0 %1031
  %v1033 = vsel %vm500, %v483, 0.0
  %1034 = vadd.xlane.f32.xlu0 %v1033
  %v1035 = vpop.xlane.xlu0 %1034
  %v1036 = vsel %vm500, %v484, 0.0
  %1037 = vadd.xlane.f32.xlu0 %v1036
  %v1038 = vpop.xlane.xlu0 %1037
  %v1039 = vsel %vm500, %v485, 0.0
  %1040 = vadd.xlane.f32.xlu0 %v1039
  %v1041 = vpop.xlane.xlu0 %1040
  %v1042 = vsel %vm500, %v486, 0.0
  %1043 = vadd.xlane.f32.xlu0 %v1042
  %v1044 = vpop.xlane.xlu0 %1043
  %v1045 = vsel %vm500, %v487, 0.0
  %1046 = vadd.xlane.f32.xlu0 %v1045
  %v1047 = vpop.xlane.xlu0 %1046
  %v1048 = vsel %vm500, %v488, 0.0
  %1049 = vadd.xlane.f32.xlu0 %v1048
  %v1050 = vpop.xlane.xlu0 %1049
  %v1051 = vsel %vm500, %v489, 0.0
  %1052 = vadd.xlane.f32.xlu0 %v1051
  %v1053 = vpop.xlane.xlu0 %1052
  %v1054 = vsel %vm500, %v490, 0.0
  %1055 = vadd.xlane.f32.xlu0 %v1054
  %v1056 = vpop.xlane.xlu0 %1055
  %v1057 = vsel %vm500, %v491, 0.0
  %1058 = vadd.xlane.f32.xlu0 %v1057
  %v1059 = vpop.xlane.xlu0 %1058
  %v1060 = vsel %vm500, %v492, 0.0
  %1061 = vadd.xlane.f32.xlu0 %v1060
  %v1062 = vpop.xlane.xlu0 %1061
  %v1063 = vsel %vm500, %v493, 0.0
  %1064 = vadd.xlane.f32.xlu0 %v1063
  %v1065 = vpop.xlane.xlu0 %1064
  %v1066 = vsel %vm500, %v494, 0.0
  %1067 = vadd.xlane.f32.xlu0 %v1066
  %v1068 = vpop.xlane.xlu0 %1067
  %v1069 = vsel %vm500, %v495, 0.0
  %1070 = vadd.xlane.f32.xlu0 %v1069
  %v1071 = vpop.xlane.xlu0 %1070
  %v1072 = vsel %vm500, %v496, 0.0
  %1073 = vadd.xlane.f32.xlu0 %v1072
  %v1074 = vpop.xlane.xlu0 %1073
  %v1075 = vsel %vm500, %v497, 0.0
  %1076 = vadd.xlane.f32.xlu0 %v1075
  %v1077 = vpop.xlane.xlu0 %1076
  %v1078 = vsel %vm500, %v498, 0.0
  %1079 = vadd.xlane.f32.xlu0 %v1078
  %v1080 = vpop.xlane.xlu0 %1079
  %v1081 = vsel %vm789, %v499, 0.0
  %1082 = vadd.xlane.f32.xlu0 %v1081
  %v1083 = vpop.xlane.xlu0 %1082
  %v1084 = vadd.f32 %v503, %v506
  %v1085 = vadd.f32 %v1084, %v509
  %v1086 = vadd.f32 %v1085, %v512
  %v1087 = vadd.f32 %v1086, %v515
  %v1088 = vadd.f32 %v1087, %v518
  %v1089 = vadd.f32 %v1088, %v521
  %v1090 = vadd.f32 %v1089, %v524
  %v1091 = vadd.f32 %v1090, %v527
  %v1092 = vadd.f32 %v1091, %v530
  %v1093 = vadd.f32 %v1092, %v533
  %v1094 = vadd.f32 %v1093, %v536
  %v1095 = vadd.f32 %v1094, %v539
  %v1096 = vadd.f32 %v1095, %v542
  %v1097 = vadd.f32 %v1096, %v545
  %v1098 = vadd.f32 %v1097, %v548
  %v1099 = vadd.f32 %v1098, %v551
  %v1100 = vadd.f32 %v1099, %v554
  %v1101 = vadd.f32 %v1100, %v557
  %v1102 = vadd.f32 %v1101, %v560
  %v1103 = vadd.f32 %v1102, %v563
  %v1104 = vadd.f32 %v1103, %v566
  %v1105 = vadd.f32 %v1104, %v569
  %v1106 = vadd.f32 %v1105, %v572
  %v1107 = vadd.f32 %v1106, %v575
  %v1108 = vadd.f32 %v1107, %v578
  %v1109 = vadd.f32 %v1108, %v581
  %v1110 = vadd.f32 %v1109, %v584
  %v1111 = vadd.f32 %v1110, %v587
  %v1112 = vadd.f32 %v1111, %v590
  %v1113 = vadd.f32 %v1112, %v593
  %v1114 = vadd.f32 %v1113, %v596
  %v1115 = vadd.f32 %v1114, %v599
  %v1116 = vadd.f32 %v1115, %v602
  %v1117 = vadd.f32 %v1116, %v605
  %v1118 = vadd.f32 %v1117, %v608
  %v1119 = vadd.f32 %v1118, %v611
  %v1120 = vadd.f32 %v1119, %v614
  %v1121 = vadd.f32 %v1120, %v617
  %v1122 = vadd.f32 %v1121, %v620
  %v1123 = vadd.f32 %v1122, %v623
  %v1124 = vadd.f32 %v1123, %v626
  %v1125 = vadd.f32 %v1124, %v629
  %v1126 = vadd.f32 %v1125, %v632
  %v1127 = vadd.f32 %v1126, %v635
  %v1128 = vadd.f32 %v1127, %v638
  %v1129 = vadd.f32 %v1128, %v641
  %v1130 = vadd.f32 %v1129, %v644
  %v1131 = vadd.f32 %v1130, %v647
  %v1132 = vadd.f32 %v1131, %v650
  %v1133 = vadd.f32 %v1132, %v653
  %v1134 = vadd.f32 %v1133, %v656
  %v1135 = vadd.f32 %v1134, %v659
  %v1136 = vadd.f32 %v1135, %v662
  %v1137 = vadd.f32 %v1136, %v665
  %v1138 = vadd.f32 %v1137, %v668
  %v1139 = vadd.f32 %v1138, %v671
  %v1140 = vadd.f32 %v1139, %v674
  %v1141 = vadd.f32 %v1140, %v677
  %v1142 = vadd.f32 %v1141, %v680
  %v1143 = vadd.f32 %v1142, %v683
  %v1144 = vadd.f32 %v1143, %v686
  %v1145 = vadd.f32 %v1144, %v689
  %v1146 = vadd.f32 %v1145, %v692
  %v1147 = vadd.f32 %v1146, %v695
  %v1148 = vadd.f32 %v1147, %v698
  %v1149 = vadd.f32 %v1148, %v701
  %v1150 = vadd.f32 %v1149, %v704
  %v1151 = vadd.f32 %v1150, %v707
  %v1152 = vadd.f32 %v1151, %v710
  %v1153 = vadd.f32 %v1152, %v713
  %v1154 = vadd.f32 %v1153, %v716
  %v1155 = vadd.f32 %v1154, %v719
  %v1156 = vadd.f32 %v1155, %v722
  %v1157 = vadd.f32 %v1156, %v725
  %v1158 = vadd.f32 %v1157, %v728
  %v1159 = vadd.f32 %v1158, %v731
  %v1160 = vadd.f32 %v1159, %v734
  %v1161 = vadd.f32 %v1160, %v737
  %v1162 = vadd.f32 %v1161, %v740
  %v1163 = vadd.f32 %v1162, %v743
  %v1164 = vadd.f32 %v1163, %v746
  %v1165 = vadd.f32 %v1164, %v749
  %v1166 = vadd.f32 %v1165, %v752
  %v1167 = vadd.f32 %v1166, %v755
  %v1168 = vadd.f32 %v1167, %v758
  %v1169 = vadd.f32 %v1168, %v761
  %v1170 = vadd.f32 %v1169, %v764
  %v1171 = vadd.f32 %v1170, %v767
  %v1172 = vadd.f32 %v1171, %v770
  %v1173 = vadd.f32 %v1172, %v773
  %v1174 = vadd.f32 %v1173, %v776
  %v1175 = vadd.f32 %v1174, %v779
  %v1176 = vadd.f32 %v1175, %v782
  %v1177 = vadd.f32 %v1176, %v785
  %v1178 = vadd.f32 %v1177, %v788
  %vm1179 = vcmask 1040384
  %v1180 = vsel %vm1179, %v792, 0.0
  %v1181 = vadd.f32 %v1178, %v1180
  %v1182 = vrot.slane %v1181, 4
  %v1183 = vadd.f32 %v1181, %v1182
  %v1184 = vrot.slane %v1183, 2
  %v1185 = vadd.f32 %v1183, %v1184
  %v1186 = vrot.slane %v1185, 1
  %v1187 = vadd.f32 %v1185, %v1186
  %v1188 = vadd.f32 %v795, %v798
  %v1189 = vadd.f32 %v1188, %v801
  %v1190 = vadd.f32 %v1189, %v804
  %v1191 = vadd.f32 %v1190, %v807
  %v1192 = vadd.f32 %v1191, %v810
  %v1193 = vadd.f32 %v1192, %v813
  %v1194 = vadd.f32 %v1193, %v816
  %v1195 = vadd.f32 %v1194, %v819
  %v1196 = vadd.f32 %v1195, %v822
  %v1197 = vadd.f32 %v1196, %v825
  %v1198 = vadd.f32 %v1197, %v828
  %v1199 = vadd.f32 %v1198, %v831
  %v1200 = vadd.f32 %v1199, %v834
  %v1201 = vadd.f32 %v1200, %v837
  %v1202 = vadd.f32 %v1201, %v840
  %v1203 = vadd.f32 %v1202, %v843
  %v1204 = vadd.f32 %v1203, %v846
  %v1205 = vadd.f32 %v1204, %v849
  %v1206 = vadd.f32 %v1205, %v852
  %v1207 = vadd.f32 %v1206, %v855
  %v1208 = vadd.f32 %v1207, %v858
  %v1209 = vadd.f32 %v1208, %v861
  %v1210 = vadd.f32 %v1209, %v864
  %v1211 = vadd.f32 %v1210, %v867
  %v1212 = vadd.f32 %v1211, %v870
  %v1213 = vadd.f32 %v1212, %v873
  %v1214 = vadd.f32 %v1213, %v876
  %v1215 = vadd.f32 %v1214, %v879
  %v1216 = vadd.f32 %v1215, %v882
  %v1217 = vadd.f32 %v1216, %v885
  %v1218 = vadd.f32 %v1217, %v888
  %v1219 = vadd.f32 %v1218, %v891
  %v1220 = vadd.f32 %v1219, %v894
  %v1221 = vadd.f32 %v1220, %v897
  %v1222 = vadd.f32 %v1221, %v900
  %v1223 = vadd.f32 %v1222, %v903
  %v1224 = vadd.f32 %v1223, %v906
  %v1225 = vadd.f32 %v1224, %v909
  %v1226 = vadd.f32 %v1225, %v912
  %v1227 = vadd.f32 %v1226, %v915
  %v1228 = vadd.f32 %v1227, %v918
  %v1229 = vadd.f32 %v1228, %v921
  %v1230 = vadd.f32 %v1229, %v924
  %v1231 = vadd.f32 %v1230, %v927
  %v1232 = vadd.f32 %v1231, %v930
  %v1233 = vadd.f32 %v1232, %v933
  %v1234 = vadd.f32 %v1233, %v936
  %v1235 = vadd.f32 %v1234, %v939
  %v1236 = vadd.f32 %v1235, %v942
  %v1237 = vadd.f32 %v1236, %v945
  %v1238 = vadd.f32 %v1237, %v948
  %v1239 = vadd.f32 %v1238, %v951
  %v1240 = vadd.f32 %v1239, %v954
  %v1241 = vadd.f32 %v1240, %v957
  %v1242 = vadd.f32 %v1241, %v960
  %v1243 = vadd.f32 %v1242, %v963
  %v1244 = vadd.f32 %v1243, %v966
  %v1245 = vadd.f32 %v1244, %v969
  %v1246 = vadd.f32 %v1245, %v972
  %v1247 = vadd.f32 %v1246, %v975
  %v1248 = vadd.f32 %v1247, %v978
  %v1249 = vadd.f32 %v1248, %v981
  %v1250 = vadd.f32 %v1249, %v984
  %v1251 = vadd.f32 %v1250, %v987
  %v1252 = vadd.f32 %v1251, %v990
  %v1253 = vadd.f32 %v1252, %v993
  %v1254 = vadd.f32 %v1253, %v996
  %v1255 = vadd.f32 %v1254, %v999
  %v1256 = vadd.f32 %v1255, %v1002
  %v1257 = vadd.f32 %v1256, %v1005
  %v1258 = vadd.f32 %v1257, %v1008
  %v1259 = vadd.f32 %v1258, %v1011
  %v1260 = vadd.f32 %v1259, %v1014
  %v1261 = vadd.f32 %v1260, %v1017
  %v1262 = vadd.f32 %v1261, %v1020
  %v1263 = vadd.f32 %v1262, %v1023
  %v1264 = vadd.f32 %v1263, %v1026
  %v1265 = vadd.f32 %v1264, %v1029
  %v1266 = vadd.f32 %v1265, %v1032
  %v1267 = vadd.f32 %v1266, %v1035
  %v1268 = vadd.f32 %v1267, %v1038
  %v1269 = vadd.f32 %v1268, %v1041
  %v1270 = vadd.f32 %v1269, %v1044
  %v1271 = vadd.f32 %v1270, %v1047
  %v1272 = vadd.f32 %v1271, %v1050
  %v1273 = vadd.f32 %v1272, %v1053
  %v1274 = vadd.f32 %v1273, %v1056
  %v1275 = vadd.f32 %v1274, %v1059
  %v1276 = vadd.f32 %v1275, %v1062
  %v1277 = vadd.f32 %v1276, %v1065
  %v1278 = vadd.f32 %v1277, %v1068
  %v1279 = vadd.f32 %v1278, %v1071
  %v1280 = vadd.f32 %v1279, %v1074
  %v1281 = vadd.f32 %v1280, %v1077
  %v1282 = vadd.f32 %v1281, %v1080
  %v1283 = vsel %vm1179, %v1083, 0.0
  %v1284 = vadd.f32 %v1282, %v1283
  %v1285 = vrot.slane %v1284, 4
  %v1286 = vadd.f32 %v1284, %v1285
  %v1287 = vrot.slane %v1286, 2
  %v1288 = vadd.f32 %v1286, %v1287
  %v1289 = vrot.slane %v1288, 1
  %v1290 = vadd.f32 %v1288, %v1289
  %s1291 = sld [smem:[#allocation2]]
  %v1292 = vstv %s1291
  %v1293 = vadd.f32 %v1187, %v1292
  %v1294 = vadd.f32 %v1290, %v1292
  %v1295 = vmax.f32 %v1293, 0.0
  %v1296 = vmax.f32 %v1294, 0.0
  %v1297 = vsub.f32 0.0, %v1295
  %v1298 = vsub.f32 0.0, %v1296
  %v1299 = vmul.f32 %v1297, 1.442695
  %v1300 = vpow.pop %v1299
  %v1301 = vmul.f32 %v1298, 1.442695
  %v1302 = vpow.pop %v1301
  %v1303 = vadd.f32 %v1300, 1.0
  %v1304 = vadd.f32 %v1302, 1.0
  %v1305 = vrcp.pop %v1303
  %v1306 = vmul.f32 %v1303, %v1305
  %v1307 = vsub.f32 1.0, %v1306
  %v1308 = vmul.f32 %v1305, %v1307
  %v1309 = vadd.f32 %v1305, %v1308
  %vm1310 = vweird.f32 %v1303
  %vm1311 = vweird.f32 %v1305
  %vm1312 = vmor %vm1310, %vm1311
  %v1313 = vsel %vm1312, %v1305, %v1309
  %v1314 = vand.u32 2147483647, %v1303
  %vm1315 = vcmp.eq.f32.partialorder %v1314, 8.507059e+37
  %v1316 = vand.u32 %v1303, 2147483648
  %v1317 = vor.u32 1.1754944e-38, %v1316
  %v1318 = vsel %vm1315, %v1317, %v1313
  %v1319 = vmul.f32 1.0, %v1318
  %v1320 = vrcp.pop %v1304
  %v1321 = vmul.f32 %v1304, %v1320
  %v1322 = vsub.f32 1.0, %v1321
  %v1323 = vmul.f32 %v1320, %v1322
  %v1324 = vadd.f32 %v1320, %v1323
  %vm1325 = vweird.f32 %v1304
  %vm1326 = vweird.f32 %v1320
  %vm1327 = vmor %vm1325, %vm1326
  %v1328 = vsel %vm1327, %v1320, %v1324
  %v1329 = vand.u32 2147483647, %v1304
  %vm1330 = vcmp.eq.f32.partialorder %v1329, 8.507059e+37
  %v1331 = vand.u32 %v1304, 2147483648
  %v1332 = vor.u32 1.1754944e-38, %v1331
  %v1333 = vsel %vm1330, %v1332, %v1328
  %v1334 = vmul.f32 1.0, %v1333
  %vm1335 = vcmask 0
  %1336 = vst.msk [vmem:[%s3] sm:$0x1] %vm1335, %v1319
  %1337 = vst.msk [vmem:[%s3 + $0x1] sm:$0x1] %vm1335, %v1334
  // Predicated region
  $region14: #{regressor_forward.1} parent=0 // pred_check
    _
  $region15: #{regressor_forward.1} parent=0 // pred_check_branch
    %1339 = sbr.rel (0) target = $region17
  $region16: #{regressor_forward.1} parent=0 // pred_region
    _
  $region17: #{regressor_forward.1} parent=0 // pred_fallthru
    _
  // Predicated region
  $region18: #{regressor_forward.1} parent=0 // pred_check
    _
  $region19: #{regressor_forward.1} parent=0 // pred_check_branch
    %1341 = sbr.rel (0) target = $region21
  $region20: #{regressor_forward.1} parent=0 // pred_region
    _
  $region21: #{regressor_forward.1} parent=0 // pred_fallthru
    _

</llo_original>
